<compile_context>
chip_gen: v7x
topology: tpu7x:2x2x1
jax: 0.10.0
libtpu: 0.0.40
codegen_flags: <defaults>
</compile_context>

<pallas_src>
import jax
import jax.numpy as jnp
from jax.experimental import pallas as pl
from jax.experimental.pallas import tpu as pltpu


def _soft_q_kernel(s_ref, a_ref, w1s_ref, w1a_ref, b1_ref,
                   w2_ref, b2_ref, w3_ref, b3_ref, o_ref):
    # Inputs cast to bf16 at the MXU boundary; accumulation + epilogue in f32.
    s = s_ref[...].astype(jnp.bfloat16)
    a = a_ref[...].astype(jnp.bfloat16)

    # Layer 1 with the concat fused: x @ W1 == state @ W1[:S] + action @ W1[S:]
    h1 = (jnp.dot(s, w1s_ref[...], preferred_element_type=jnp.float32)
          + jnp.dot(a, w1a_ref[...], preferred_element_type=jnp.float32)
          + b1_ref[...])
    h1 = jnp.maximum(h1, 0.0)                                   # relu, f32

    # Layer 2 (bf16 operands, f32 accumulate).
    h2 = jnp.dot(h1.astype(jnp.bfloat16), w2_ref[...],
                 preferred_element_type=jnp.float32) + b2_ref[...]
    h2 = jnp.maximum(h2, 0.0)                                   # relu, f32

    # Layer 3 has a single output unit: VPU multiply + lane reduction instead
    # of an N=1 MXU pass (skips a whole systolic pass + FIFO drain).
    q = jnp.sum(h2 * w3_ref[...], axis=-1, keepdims=True) + b3_ref[...]
    o_ref[...] = q.astype(o_ref.dtype)


def soft_q_forward(state, action, prepared, *, tile_b=256):
    """Pallas forward: (state, action) -> 3-layer MLP -> (B, 1) Q-values."""
    w1s, w1a, b1, w2, b2, w3_row, b3 = prepared
    state = state.astype(jnp.float32)
    action = action.astype(jnp.float32)

    B = state.shape[0]
    tile_b = min(tile_b, B)
    grid = (pl.cdiv(B, tile_b),)

    batch_map = lambda i: (i, 0)     # tiles stream along the batch axis
    fixed_map = lambda i: (0, 0)     # weights stay VMEM-resident (same block)

    return pl.pallas_call(
        _soft_q_kernel,
        out_shape=jax.ShapeDtypeStruct((B, 1), jnp.float32),
        grid=grid,
        in_specs=[
            pl.BlockSpec((tile_b, state.shape[1]), batch_map),
            pl.BlockSpec((tile_b, action.shape[1]), batch_map),
            pl.BlockSpec(w1s.shape, fixed_map),
            pl.BlockSpec(w1a.shape, fixed_map),
            pl.BlockSpec(b1.shape, fixed_map),
            pl.BlockSpec(w2.shape, fixed_map),
            pl.BlockSpec(b2.shape, fixed_map),
            pl.BlockSpec(w3_row.shape, fixed_map),
            pl.BlockSpec(b3.shape, fixed_map),
        ],
        out_specs=pl.BlockSpec((tile_b, 1), batch_map),
        compiler_params=pltpu.CompilerParams(
            dimension_semantics=("parallel",)),   # shard batch tiles across TCs
    )(state, action, w1s, w1a, b1, w2, b2, w3_row, b3)


def init_params(key, input_dim, output_dim, hidden_size=256, init_w=0.003):
    """Init matching PyTorch nn.Linear defaults (uniform +/- 1/sqrt(fan_in)),
    with linear3 overridden to uniform(-init_w, init_w).  Weights stored as
    (in, out) = PyTorch weight transposed."""
    in1 = input_dim + output_dim
    k = jax.random.split(key, 6)

    def unif(kk, shape, bound):
        return jax.random.uniform(kk, shape, jnp.float32, -bound, bound)

    bnd1 = 1.0 / jnp.sqrt(in1)
    bnd2 = 1.0 / jnp.sqrt(hidden_size)
    w1 = unif(k[0], (in1, hidden_size), bnd1)
    b1 = unif(k[1], (hidden_size,), bnd1)
    w2 = unif(k[2], (hidden_size, hidden_size), bnd2)
    b2 = unif(k[3], (hidden_size,), bnd2)
    w3 = unif(k[4], (hidden_size, 1), init_w)
    b3 = unif(k[5], (1,), init_w)
    return (w1, b1, w2, b2, w3, b3)


def prepare_params(params, input_dim):
    """One-time prep (do NOT call per step): split W1 at the concat boundary,
    cast matmul weights to bf16, reshape biases to (1, N), flatten W3 to a
    (1, hidden) f32 row for the VPU epilogue."""
    w1, b1, w2, b2, w3, b3 = params
    return (
        w1[:input_dim].astype(jnp.bfloat16),        # W1 state slice
        w1[input_dim:].astype(jnp.bfloat16),        # W1 action slice
        b1.reshape(1, -1).astype(jnp.float32),
        w2.astype(jnp.bfloat16),
        b2.reshape(1, -1).astype(jnp.float32),
        w3.reshape(1, -1).astype(jnp.float32),      # (hidden, 1) -> (1, hidden)
        b3.reshape(1, 1).astype(jnp.float32),
    )


def soft_q_reference(state, action, params):
    """Pure-JAX f32 reference (original module semantics)."""
    w1, b1, w2, b2, w3, b3 = params
    x = jnp.concatenate([state, action], axis=1).astype(jnp.float32)
    h1 = jax.nn.relu(x @ w1 + b1)
    h2 = jax.nn.relu(h1 @ w2 + b2)
    return h2 @ w3 + b3


if __name__ == "__main__":
    key = jax.random.PRNGKey(0)
    k_s, k_a, k_p = jax.random.split(key, 3)

    batch = 64
    input_dim = 16   # state dim
    output_dim = 8   # action dim
    hidden = 32

    state = jax.random.normal(k_s, (batch, input_dim), jnp.float32)
    action = jax.random.normal(k_a, (batch, output_dim), jnp.float32)
    params = init_params(k_p, input_dim, output_dim, hidden_size=hidden)
    prepared = prepare_params(params, input_dim)     # one-time, outside the loop

    fwd = jax.jit(soft_q_forward, static_argnames=("tile_b",))
    out = fwd(state, action, prepared, tile_b=16)    # grid=(4,), exercises tiling
    out = jax.block_until_ready(out)

    ref = soft_q_reference(state, action, params)
    assert out.shape == (batch, 1)
    # bf16 matmul operands vs. f32 reference -> relaxed tolerance (expected).
    assert jnp.allclose(out, ref, atol=1e-2, rtol=1e-2), \
        float(jnp.max(jnp.abs(out - ref)))

    print("KERNEL_OK")
</pallas_src>

<mosaic_0001>
module attributes {stable_mosaic.version = 11 : i64} {
  func.func @_soft_q_kernel(%arg0: i32, %arg1: memref<16x16xf32, #tpu.memory_space<vmem>>, %arg2: memref<16x8xf32, #tpu.memory_space<vmem>>, %arg3: memref<16x32xbf16, #tpu.memory_space<vmem>>, %arg4: memref<8x32xbf16, #tpu.memory_space<vmem>>, %arg5: memref<1x32xf32, #tpu.memory_space<vmem>>, %arg6: memref<32x32xbf16, #tpu.memory_space<vmem>>, %arg7: memref<1x32xf32, #tpu.memory_space<vmem>>, %arg8: memref<1x32xf32, #tpu.memory_space<vmem>>, %arg9: memref<1x1xf32, #tpu.memory_space<vmem>>, %arg10: memref<16x1xf32, #tpu.memory_space<vmem>>) attributes {dimension_semantics = [#tpu.dimension_semantics<parallel>], iteration_bounds = array<i64: 4>, scalar_prefetch = 0 : i64, scratch_operands = 0 : i64, tpu.core_type = #tpu.core_type<tc>, window_params = [{transform_indices = @transform_0, window_bounds = array<i64: 16, 16>}, {transform_indices = @transform_1, window_bounds = array<i64: 16, 8>}, {pipeline_mode = #tpu.pipeline_mode<synchronous>, transform_indices = @transform_2, window_bounds = array<i64: 16, 32>}, {pipeline_mode = #tpu.pipeline_mode<synchronous>, transform_indices = @transform_3, window_bounds = array<i64: 8, 32>}, {pipeline_mode = #tpu.pipeline_mode<synchronous>, transform_indices = @transform_4, window_bounds = array<i64: 1, 32>}, {pipeline_mode = #tpu.pipeline_mode<synchronous>, transform_indices = @transform_5, window_bounds = array<i64: 32, 32>}, {pipeline_mode = #tpu.pipeline_mode<synchronous>, transform_indices = @transform_6, window_bounds = array<i64: 1, 32>}, {pipeline_mode = #tpu.pipeline_mode<synchronous>, transform_indices = @transform_7, window_bounds = array<i64: 1, 32>}, {pipeline_mode = #tpu.pipeline_mode<synchronous>, transform_indices = @transform_8, window_bounds = array<i64: 1, 1>}, {transform_indices = @transform_9, window_bounds = array<i64: 16, 1>}]} {
    %c0 = arith.constant 0 : index
    %c0_0 = arith.constant 0 : index
    %0 = vector.load %arg1[%c0, %c0_0] : memref<16x16xf32, #tpu.memory_space<vmem>>, vector<16x16xf32>
    %1 = arith.truncf %0 : vector<16x16xf32> to vector<16x16xbf16>
    %c0_1 = arith.constant 0 : index
    %c0_2 = arith.constant 0 : index
    %2 = vector.load %arg2[%c0_1, %c0_2] : memref<16x8xf32, #tpu.memory_space<vmem>>, vector<16x8xf32>
    %3 = arith.truncf %2 : vector<16x8xf32> to vector<16x8xbf16>
    %c0_3 = arith.constant 0 : index
    %c0_4 = arith.constant 0 : index
    %4 = vector.load %arg3[%c0_3, %c0_4] : memref<16x32xbf16, #tpu.memory_space<vmem>>, vector<16x32xbf16>
    %cst = arith.constant dense<0.000000e+00> : vector<16x32xf32>
    %5 = tpu.matmul %1, %4, %cst {dimension_numbers = #tpu.dot_dimension_numbers<[1], [0], [0], [1], [0, 0, 1, 1], [], []>} : vector<16x16xbf16>, vector<16x32xbf16>, vector<16x32xf32> -> vector<16x32xf32>
    %c0_5 = arith.constant 0 : index
    %c0_6 = arith.constant 0 : index
    %6 = vector.load %arg4[%c0_5, %c0_6] : memref<8x32xbf16, #tpu.memory_space<vmem>>, vector<8x32xbf16>
    %cst_7 = arith.constant dense<0.000000e+00> : vector<16x32xf32>
    %7 = tpu.matmul %3, %6, %cst_7 {dimension_numbers = #tpu.dot_dimension_numbers<[1], [0], [0], [1], [0, 0, 1, 1], [], []>} : vector<16x8xbf16>, vector<8x32xbf16>, vector<16x32xf32> -> vector<16x32xf32>
    %8 = arith.addf %5, %7 : vector<16x32xf32>
    %c0_8 = arith.constant 0 : index
    %c0_9 = arith.constant 0 : index
    %9 = vector.load %arg5[%c0_8, %c0_9] : memref<1x32xf32, #tpu.memory_space<vmem>>, vector<1x32xf32>
    %10 = vector.broadcast %9 : vector<1x32xf32> to vector<16x32xf32>
    %11 = arith.addf %8, %10 : vector<16x32xf32>
    %cst_10 = arith.constant 0.000000e+00 : f32
    %12 = vector.broadcast %cst_10 : f32 to vector<16x32xf32>
    %13 = arith.maximumf %11, %12 : vector<16x32xf32>
    %14 = arith.truncf %13 : vector<16x32xf32> to vector<16x32xbf16>
    %c0_11 = arith.constant 0 : index
    %c0_12 = arith.constant 0 : index
    %15 = vector.load %arg6[%c0_11, %c0_12] : memref<32x32xbf16, #tpu.memory_space<vmem>>, vector<32x32xbf16>
    %cst_13 = arith.constant dense<0.000000e+00> : vector<16x32xf32>
    %16 = tpu.matmul %14, %15, %cst_13 {dimension_numbers = #tpu.dot_dimension_numbers<[1], [0], [0], [1], [0, 0, 1, 1], [], []>} : vector<16x32xbf16>, vector<32x32xbf16>, vector<16x32xf32> -> vector<16x32xf32>
    %c0_14 = arith.constant 0 : index
    %c0_15 = arith.constant 0 : index
    %17 = vector.load %arg7[%c0_14, %c0_15] : memref<1x32xf32, #tpu.memory_space<vmem>>, vector<1x32xf32>
    %18 = vector.broadcast %17 : vector<1x32xf32> to vector<16x32xf32>
    %19 = arith.addf %16, %18 : vector<16x32xf32>
    %cst_16 = arith.constant 0.000000e+00 : f32
    %20 = vector.broadcast %cst_16 : f32 to vector<16x32xf32>
    %21 = arith.maximumf %19, %20 : vector<16x32xf32>
    %c0_17 = arith.constant 0 : index
    %c0_18 = arith.constant 0 : index
    %22 = vector.load %arg8[%c0_17, %c0_18] : memref<1x32xf32, #tpu.memory_space<vmem>>, vector<1x32xf32>
    %23 = vector.broadcast %22 : vector<1x32xf32> to vector<16x32xf32>
    %24 = arith.mulf %21, %23 : vector<16x32xf32>
    %cst_19 = arith.constant dense<0.000000e+00> : vector<16xf32>
    %25 = vector.multi_reduction <add>, %24, %cst_19 [1] : vector<16x32xf32> to vector<16xf32>
    %26 = vector.shape_cast %25 : vector<16xf32> to vector<16x1xf32>
    %c0_20 = arith.constant 0 : index
    %c0_21 = arith.constant 0 : index
    %27 = vector.load %arg9[%c0_20, %c0_21] : memref<1x1xf32, #tpu.memory_space<vmem>>, vector<1x1xf32>
    %28 = vector.broadcast %27 : vector<1x1xf32> to vector<16x1xf32>
    %29 = arith.addf %26, %28 : vector<16x1xf32>
    %c0_22 = arith.constant 0 : index
    %c0_23 = arith.constant 0 : index
    %30 = vector.load %arg10[%c0_22, %c0_23] : memref<16x1xf32, #tpu.memory_space<vmem>>, vector<16x1xf32>
    tpu.vector_store %arg10[%c0_22, %c0_23], %29 {strides = array<i32>} : memref<16x1xf32, #tpu.memory_space<vmem>>, vector<16x1xf32>,
    return
  }
  func.func @transform_0(%arg0: i32) -> (i32, i32) {
    %c0_i32 = arith.constant 0 : i32
    %c0_i32_0 = arith.constant 0 : i32
    return %arg0, %c0_i32 : i32, i32
  }
  func.func @transform_1(%arg0: i32) -> (i32, i32) {
    %c0_i32 = arith.constant 0 : i32
    %c0_i32_0 = arith.constant 0 : i32
    return %arg0, %c0_i32 : i32, i32
  }
  func.func @transform_2(%arg0: i32) -> (i32, i32) {
    %c0_i32 = arith.constant 0 : i32
    %c0_i32_0 = arith.constant 0 : i32
    %c0_i32_1 = arith.constant 0 : i32
    return %c0_i32, %c0_i32_0 : i32, i32
  }
  func.func @transform_3(%arg0: i32) -> (i32, i32) {
    %c0_i32 = arith.constant 0 : i32
    %c0_i32_0 = arith.constant 0 : i32
    %c0_i32_1 = arith.constant 0 : i32
    return %c0_i32, %c0_i32_0 : i32, i32
  }
  func.func @transform_4(%arg0: i32) -> (i32, i32) {
    %c0_i32 = arith.constant 0 : i32
    %c0_i32_0 = arith.constant 0 : i32
    %c0_i32_1 = arith.constant 0 : i32
    return %c0_i32, %c0_i32_0 : i32, i32
  }
  func.func @transform_5(%arg0: i32) -> (i32, i32) {
    %c0_i32 = arith.constant 0 : i32
    %c0_i32_0 = arith.constant 0 : i32
    %c0_i32_1 = arith.constant 0 : i32
    return %c0_i32, %c0_i32_0 : i32, i32
  }
  func.func @transform_6(%arg0: i32) -> (i32, i32) {
    %c0_i32 = arith.constant 0 : i32
    %c0_i32_0 = arith.constant 0 : i32
    %c0_i32_1 = arith.constant 0 : i32
    return %c0_i32, %c0_i32_0 : i32, i32
  }
  func.func @transform_7(%arg0: i32) -> (i32, i32) {
    %c0_i32 = arith.constant 0 : i32
    %c0_i32_0 = arith.constant 0 : i32
    %c0_i32_1 = arith.constant 0 : i32
    return %c0_i32, %c0_i32_0 : i32, i32
  }
  func.func @transform_8(%arg0: i32) -> (i32, i32) {
    %c0_i32 = arith.constant 0 : i32
    %c0_i32_0 = arith.constant 0 : i32
    %c0_i32_1 = arith.constant 0 : i32
    return %c0_i32, %c0_i32_0 : i32, i32
  }
  func.func @transform_9(%arg0: i32) -> (i32, i32) {
    %c0_i32 = arith.constant 0 : i32
    %c0_i32_0 = arith.constant 0 : i32
    return %arg0, %c0_i32 : i32, i32
  }
}

</mosaic_0001>

<llo_original>
// kernel: soft_q_forward.1
$region0: #{soft_q_forward.1}
  #allocation0 [shape = 'u32[]', space=smem, size = 0x4, offset = 0x4, fixed_abs, tag = 'smem constant byte address 0x4 - core index']
  #allocation1 [shape = 'u32[144,128]{1,0:T(1,128)}', space=vmem, size = 0x12000, scoped, tag = 'internal scratch']
  #allocation2 [shape = 'f32[1,1]{1,0:T(1,128)S(1)}', space=vmem, size = 0x200, scoped, tag = 'scoped memory for soft_q_forward.1']
  %s0 = inlined_call_operand.vmem [shape: f32[64,16], index: 0, kind: input, shape index: {}]
  %s1 = inlined_call_operand.vmem [shape: f32[64,8], index: 1, kind: input, shape index: {}]
  %s2 = inlined_call_operand.vmem [shape: bf16[16,32], index: 2, kind: input, shape index: {}]
  %s3 = inlined_call_operand.vmem [shape: bf16[8,32], index: 3, kind: input, shape index: {}]
  %s4 = inlined_call_operand.vmem [shape: f32[1,32], index: 4, kind: input, shape index: {}]
  %s5 = inlined_call_operand.vmem [shape: bf16[32,32], index: 5, kind: input, shape index: {}]
  %s6 = inlined_call_operand.vmem [shape: f32[1,32], index: 6, kind: input, shape index: {}]
  %s7 = inlined_call_operand.vmem [shape: f32[1,32], index: 7, kind: input, shape index: {}]
  %s8 = inlined_call_operand.<no memory space> [shape: f32[1,1], index: 8, kind: input, shape index: {}]
  %s9 = inlined_call_operand.vmem [shape: f32[64,1], index: 9, kind: output, shape index: {}]
  %s10 = sld [smem:[#allocation0]]
  $region69: #{soft_q_forward.1} parent=0
    _
  %s12 = ssub.s32 1, %s10
  %s13 = scalar_select 0, %s12, %s10
  %v14 = vstv %s8
  %15 = vst [vmem:[#allocation2] sm:$0x1] %v14
  loop: start=0, step=1, limit=6
  $region2: #{soft_q_forward.1} parent=0 // loop_pre_header
    _
  $region3: #{soft_q_forward.1} parent=0 // loop_header
    %s17 = sphi 0, %s21
    %p18 = scmp.ge.s32.totalorder %s17, 6
    %s27 = sphi 0, %s29
    %s30 = sphi 0, %s27
    %s31 = sphi 0, %s30
    %s47 = sphi 0, %s31
    %s53 = sphi 0, %s55
    %s56 = sphi 0, %s53
    %s57 = sphi 0, %s56
    %s73 = sphi 0, %s57
    %s77 = sphi 0, %s77
    %s79 = sphi 0, %s77
    %s80 = sphi 0, %s79
    %s94 = sphi 0, %s80
    %s98 = sphi 0, %s98
    %s100 = sphi 0, %s98
    %s101 = sphi 0, %s100
    %s115 = sphi 0, %s101
    %s119 = sphi 0, %s119
    %s121 = sphi 0, %s119
    %s122 = sphi 0, %s121
    %s136 = sphi 0, %s122
    %s140 = sphi 0, %s140
    %s142 = sphi 0, %s140
    %s143 = sphi 0, %s142
    %s157 = sphi 0, %s143
    %s161 = sphi 0, %s161
    %s163 = sphi 0, %s161
    %s164 = sphi 0, %s163
    %s178 = sphi 0, %s164
    %s182 = sphi 0, %s182
    %s184 = sphi 0, %s182
    %s185 = sphi 0, %s184
    %s199 = sphi 0, %s185
    %s203 = sphi 0, %s203
    %s205 = sphi 0, %s203
    %s206 = sphi 0, %s205
    %s220 = sphi 0, %s206
    %s226 = sphi 0, %s228
    %s229 = sphi 0, %s226
    %s230 = sphi 0, %s229
    %s246 = sphi 0, %s230
  $region4: #{soft_q_forward.1} parent=0 // loop_header_branch
    %20 = sbr.rel (%p18) target = $region8
  $region5: #{soft_q_forward.1} parent=0 // loop_body
    %s22 = ssub.s32 %s17, 1
    %s23 = ssub.s32 %s17, 2
    %s24 = sadd.s32 %s17, 1
    %s25 = ssub.s32 %s17, %s24
    %p26 = scmp.eq.s32.totalorder %s25, 0
    %s28 = sadd.s32 %s27, 1
    %s29 = scalar_select %p26, %s27, %s28
    %p32 = pneg %p26
    %p33 = scmp.eq.s32.totalorder %s17, 3
    %p34 = por %p32, %p33
    %p35 = scmp.ne.s32.totalorder %s27, %s30
    %p36 = scmp.eq.s32.totalorder %s17, 0
    %p37 = por %p35, %p36
    %p38 = scmp.ne.s32.totalorder %s27, %s30
    %p39 = scmp.eq.s32.totalorder %s22, 3
    %p40 = por %p38, %p39
    %p41 = scmp.ne.s32.totalorder %s30, %s31
    %p42 = scmp.eq.s32.totalorder %s22, 0
    %p43 = por %p41, %p42
    %p44 = scmp.ne.s32.totalorder %s30, %s31
    %p45 = scmp.eq.s32.totalorder %s23, 3
    %p46 = por %p44, %p45
    %p48 = scmp.ne.s32.totalorder %s31, %s47
    %p49 = scmp.eq.s32.totalorder %s23, 0
    %p50 = por %p48, %p49
    %s51 = ssub.s32 %s17, %s24
    %p52 = scmp.eq.s32.totalorder %s51, 0
    %s54 = sadd.s32 %s53, 1
    %s55 = scalar_select %p52, %s53, %s54
    %p58 = pneg %p52
    %p59 = scmp.eq.s32.totalorder %s17, 3
    %p60 = por %p58, %p59
    %p61 = scmp.ne.s32.totalorder %s53, %s56
    %p62 = scmp.eq.s32.totalorder %s17, 0
    %p63 = por %p61, %p62
    %p64 = scmp.ne.s32.totalorder %s53, %s56
    %p65 = scmp.eq.s32.totalorder %s22, 3
    %p66 = por %p64, %p65
    %p67 = scmp.ne.s32.totalorder %s56, %s57
    %p68 = scmp.eq.s32.totalorder %s22, 0
    %p69 = por %p67, %p68
    %p70 = scmp.ne.s32.totalorder %s56, %s57
    %p71 = scmp.eq.s32.totalorder %s23, 3
    %p72 = por %p70, %p71
    %p74 = scmp.ne.s32.totalorder %s57, %s73
    %p75 = scmp.eq.s32.totalorder %s23, 0
    %p76 = por %p74, %p75
    %s78 = sadd.s32 %s77, 1
    %p81 = scmp.eq.s32.totalorder %s17, 3
    %p82 = scmp.ne.s32.totalorder %s77, %s79
    %p83 = scmp.eq.s32.totalorder %s17, 0
    %p84 = por %p82, %p83
    %p85 = scmp.ne.s32.totalorder %s77, %s79
    %p86 = scmp.eq.s32.totalorder %s22, 3
    %p87 = por %p85, %p86
    %p88 = scmp.ne.s32.totalorder %s79, %s80
    %p89 = scmp.eq.s32.totalorder %s22, 0
    %p90 = por %p88, %p89
    %p91 = scmp.ne.s32.totalorder %s79, %s80
    %p92 = scmp.eq.s32.totalorder %s23, 3
    %p93 = por %p91, %p92
    %p95 = scmp.ne.s32.totalorder %s80, %s94
    %p96 = scmp.eq.s32.totalorder %s23, 0
    %p97 = por %p95, %p96
    %s99 = sadd.s32 %s98, 1
    %p102 = scmp.eq.s32.totalorder %s17, 3
    %p103 = scmp.ne.s32.totalorder %s98, %s100
    %p104 = scmp.eq.s32.totalorder %s17, 0
    %p105 = por %p103, %p104
    %p106 = scmp.ne.s32.totalorder %s98, %s100
    %p107 = scmp.eq.s32.totalorder %s22, 3
    %p108 = por %p106, %p107
    %p109 = scmp.ne.s32.totalorder %s100, %s101
    %p110 = scmp.eq.s32.totalorder %s22, 0
    %p111 = por %p109, %p110
    %p112 = scmp.ne.s32.totalorder %s100, %s101
    %p113 = scmp.eq.s32.totalorder %s23, 3
    %p114 = por %p112, %p113
    %p116 = scmp.ne.s32.totalorder %s101, %s115
    %p117 = scmp.eq.s32.totalorder %s23, 0
    %p118 = por %p116, %p117
    %s120 = sadd.s32 %s119, 1
    %p123 = scmp.eq.s32.totalorder %s17, 3
    %p124 = scmp.ne.s32.totalorder %s119, %s121
    %p125 = scmp.eq.s32.totalorder %s17, 0
    %p126 = por %p124, %p125
    %p127 = scmp.ne.s32.totalorder %s119, %s121
    %p128 = scmp.eq.s32.totalorder %s22, 3
    %p129 = por %p127, %p128
    %p130 = scmp.ne.s32.totalorder %s121, %s122
    %p131 = scmp.eq.s32.totalorder %s22, 0
    %p132 = por %p130, %p131
    %p133 = scmp.ne.s32.totalorder %s121, %s122
    %p134 = scmp.eq.s32.totalorder %s23, 3
    %p135 = por %p133, %p134
    %p137 = scmp.ne.s32.totalorder %s122, %s136
    %p138 = scmp.eq.s32.totalorder %s23, 0
    %p139 = por %p137, %p138
    %s141 = sadd.s32 %s140, 1
    %p144 = scmp.eq.s32.totalorder %s17, 3
    %p145 = scmp.ne.s32.totalorder %s140, %s142
    %p146 = scmp.eq.s32.totalorder %s17, 0
    %p147 = por %p145, %p146
    %p148 = scmp.ne.s32.totalorder %s140, %s142
    %p149 = scmp.eq.s32.totalorder %s22, 3
    %p150 = por %p148, %p149
    %p151 = scmp.ne.s32.totalorder %s142, %s143
    %p152 = scmp.eq.s32.totalorder %s22, 0
    %p153 = por %p151, %p152
    %p154 = scmp.ne.s32.totalorder %s142, %s143
    %p155 = scmp.eq.s32.totalorder %s23, 3
    %p156 = por %p154, %p155
    %p158 = scmp.ne.s32.totalorder %s143, %s157
    %p159 = scmp.eq.s32.totalorder %s23, 0
    %p160 = por %p158, %p159
    %s162 = sadd.s32 %s161, 1
    %p165 = scmp.eq.s32.totalorder %s17, 3
    %p166 = scmp.ne.s32.totalorder %s161, %s163
    %p167 = scmp.eq.s32.totalorder %s17, 0
    %p168 = por %p166, %p167
    %p169 = scmp.ne.s32.totalorder %s161, %s163
    %p170 = scmp.eq.s32.totalorder %s22, 3
    %p171 = por %p169, %p170
    %p172 = scmp.ne.s32.totalorder %s163, %s164
    %p173 = scmp.eq.s32.totalorder %s22, 0
    %p174 = por %p172, %p173
    %p175 = scmp.ne.s32.totalorder %s163, %s164
    %p176 = scmp.eq.s32.totalorder %s23, 3
    %p177 = por %p175, %p176
    %p179 = scmp.ne.s32.totalorder %s164, %s178
    %p180 = scmp.eq.s32.totalorder %s23, 0
    %p181 = por %p179, %p180
    %s183 = sadd.s32 %s182, 1
    %p186 = scmp.eq.s32.totalorder %s17, 3
    %p187 = scmp.ne.s32.totalorder %s182, %s184
    %p188 = scmp.eq.s32.totalorder %s17, 0
    %p189 = por %p187, %p188
    %p190 = scmp.ne.s32.totalorder %s182, %s184
    %p191 = scmp.eq.s32.totalorder %s22, 3
    %p192 = por %p190, %p191
    %p193 = scmp.ne.s32.totalorder %s184, %s185
    %p194 = scmp.eq.s32.totalorder %s22, 0
    %p195 = por %p193, %p194
    %p196 = scmp.ne.s32.totalorder %s184, %s185
    %p197 = scmp.eq.s32.totalorder %s23, 3
    %p198 = por %p196, %p197
    %p200 = scmp.ne.s32.totalorder %s185, %s199
    %p201 = scmp.eq.s32.totalorder %s23, 0
    %p202 = por %p200, %p201
    %s204 = sadd.s32 %s203, 1
    %p207 = scmp.eq.s32.totalorder %s17, 3
    %p208 = scmp.ne.s32.totalorder %s203, %s205
    %p209 = scmp.eq.s32.totalorder %s17, 0
    %p210 = por %p208, %p209
    %p211 = scmp.ne.s32.totalorder %s203, %s205
    %p212 = scmp.eq.s32.totalorder %s22, 3
    %p213 = por %p211, %p212
    %p214 = scmp.ne.s32.totalorder %s205, %s206
    %p215 = scmp.eq.s32.totalorder %s22, 0
    %p216 = por %p214, %p215
    %p217 = scmp.ne.s32.totalorder %s205, %s206
    %p218 = scmp.eq.s32.totalorder %s23, 3
    %p219 = por %p217, %p218
    %p221 = scmp.ne.s32.totalorder %s206, %s220
    %p222 = scmp.eq.s32.totalorder %s23, 0
    %p223 = por %p221, %p222
    %s224 = ssub.s32 %s17, %s24
    %p225 = scmp.eq.s32.totalorder %s224, 0
    %s227 = sadd.s32 %s226, 1
    %s228 = scalar_select %p225, %s226, %s227
    %p231 = pneg %p225
    %p232 = scmp.eq.s32.totalorder %s17, 3
    %p233 = por %p231, %p232
    %p234 = scmp.ne.s32.totalorder %s226, %s229
    %p235 = scmp.eq.s32.totalorder %s17, 0
    %p236 = por %p234, %p235
    %p237 = scmp.ne.s32.totalorder %s226, %s229
    %p238 = scmp.eq.s32.totalorder %s22, 3
    %p239 = por %p237, %p238
    %p240 = scmp.ne.s32.totalorder %s229, %s230
    %p241 = scmp.eq.s32.totalorder %s22, 0
    %p242 = por %p240, %p241
    %p243 = scmp.ne.s32.totalorder %s229, %s230
    %p244 = scmp.eq.s32.totalorder %s23, 3
    %p245 = por %p243, %p244
    %p247 = scmp.ne.s32.totalorder %s230, %s246
    %p248 = scmp.eq.s32.totalorder %s23, 0
    %p249 = por %p247, %p248
    %p250 = scmp.le.s32.totalorder 1, %s17
    %p251 = scmp.lt.s32.totalorder %s17, 5
    %p252 = pnand %p250, %p251
    %p253 = pneg %p252
    // Predicated region
    $region9: #{soft_q_forward.1} parent=5 // pred_check
      _
    $region10: #{soft_q_forward.1} parent=5 // pred_check_branch
      %255 = sbr.rel (%p252) target = $region12
    $region11: #{soft_q_forward.1} parent=5 // pred_region
      %s256 = ssub.s32 %s17, 1
      // Predicated region
      $region13: #{soft_q_forward.1} parent=11 // pred_check
        %p257 = pneg %p90
      $region14: #{soft_q_forward.1} parent=11 // pred_check_branch
        %259 = sbr.rel (%p257) target = $region16
      $region15: #{soft_q_forward.1} parent=11 // pred_region
        _
      $region16: #{soft_q_forward.1} parent=11 // pred_fallthru
        _
      // Predicated region
      $region17: #{soft_q_forward.1} parent=11 // pred_check
        %p260 = pneg %p111
      $region18: #{soft_q_forward.1} parent=11 // pred_check_branch
        %262 = sbr.rel (%p260) target = $region20
      $region19: #{soft_q_forward.1} parent=11 // pred_region
        _
      $region20: #{soft_q_forward.1} parent=11 // pred_fallthru
        _
      // Predicated region
      $region21: #{soft_q_forward.1} parent=11 // pred_check
        %p263 = pneg %p132
      $region22: #{soft_q_forward.1} parent=11 // pred_check_branch
        %265 = sbr.rel (%p263) target = $region24
      $region23: #{soft_q_forward.1} parent=11 // pred_region
        _
      $region24: #{soft_q_forward.1} parent=11 // pred_fallthru
        _
      // Predicated region
      $region25: #{soft_q_forward.1} parent=11 // pred_check
        %p266 = pneg %p153
      $region26: #{soft_q_forward.1} parent=11 // pred_check_branch
        %268 = sbr.rel (%p266) target = $region28
      $region27: #{soft_q_forward.1} parent=11 // pred_region
        _
      $region28: #{soft_q_forward.1} parent=11 // pred_fallthru
        _
      // Predicated region
      $region29: #{soft_q_forward.1} parent=11 // pred_check
        %p269 = pneg %p174
      $region30: #{soft_q_forward.1} parent=11 // pred_check_branch
        %271 = sbr.rel (%p269) target = $region32
      $region31: #{soft_q_forward.1} parent=11 // pred_region
        _
      $region32: #{soft_q_forward.1} parent=11 // pred_fallthru
        _
      // Predicated region
      $region33: #{soft_q_forward.1} parent=11 // pred_check
        %p272 = pneg %p195
      $region34: #{soft_q_forward.1} parent=11 // pred_check_branch
        %274 = sbr.rel (%p272) target = $region36
      $region35: #{soft_q_forward.1} parent=11 // pred_region
        _
      $region36: #{soft_q_forward.1} parent=11 // pred_fallthru
        _
      // Predicated region
      $region37: #{soft_q_forward.1} parent=11 // pred_check
        %p275 = pneg %p216
      $region38: #{soft_q_forward.1} parent=11 // pred_check_branch
        %277 = sbr.rel (%p275) target = $region40
      $region39: #{soft_q_forward.1} parent=11 // pred_region
        _
      $region40: #{soft_q_forward.1} parent=11 // pred_fallthru
        _
    $region12: #{soft_q_forward.1} parent=5 // pred_fallthru
      _
    %p278 = scmp.lt.s32.totalorder %s17, 4
    // Predicated region
    $region41: #{soft_q_forward.1} parent=5 // pred_check
      %p279 = pneg %p278
    $region42: #{soft_q_forward.1} parent=5 // pred_check_branch
      %281 = sbr.rel (%p279) target = $region44
    $region43: #{soft_q_forward.1} parent=5 // pred_region
      // Predicated region
      $region45: #{soft_q_forward.1} parent=43 // pred_check
        %p282 = pneg %p37
      $region46: #{soft_q_forward.1} parent=43 // pred_check_branch
        %284 = sbr.rel (%p282) target = $region48
      $region47: #{soft_q_forward.1} parent=43 // pred_region
        %s285 = smul.u32 2, %s17
        %p286 = scmp.lt.s32.totalorder %s285, 7
        %s287 = scalar_select %p286, %s285, 7
        %s288 = smul.addr %s287, 8
        %s289 = scalar_lea.vmem %s0, %s288
        %s290 = smul.u32 2, %s17
      $region48: #{soft_q_forward.1} parent=43 // pred_fallthru
        _
      // Predicated region
      $region49: #{soft_q_forward.1} parent=43 // pred_check
        %p291 = pneg %p63
      $region50: #{soft_q_forward.1} parent=43 // pred_check_branch
        %293 = sbr.rel (%p291) target = $region52
      $region51: #{soft_q_forward.1} parent=43 // pred_region
        %s294 = smul.u32 2, %s17
        %p295 = scmp.lt.s32.totalorder %s294, 7
        %s296 = scalar_select %p295, %s294, 7
        %s297 = smul.addr %s296, 8
        %s298 = scalar_lea.vmem %s1, %s297
        %s299 = smul.u32 2, %s17
      $region52: #{soft_q_forward.1} parent=43 // pred_fallthru
        _
    $region44: #{soft_q_forward.1} parent=5 // pred_fallthru
      _
    %p300 = scmp.le.s32.totalorder 1, %s17
    %p301 = scmp.lt.s32.totalorder %s17, 5
    %p302 = pnand %p300, %p301
    %p303 = pneg %p302
    // Predicated region
    $region53: #{soft_q_forward.1} parent=5 // pred_check
      _
    $region54: #{soft_q_forward.1} parent=5 // pred_check_branch
      %305 = sbr.rel (%p302) target = $region56
    $region55: #{soft_q_forward.1} parent=5 // pred_region
      %s306 = ssub.s32 %s17, 1
      %s307 = smul.u32 2, %s22
      %p308 = scmp.lt.s32.totalorder %s307, 7
      %s309 = scalar_select %p308, %s307, 7
      %s310 = smul.addr %s309, 8
      %s311 = scalar_lea.vmem %s0, %s310
      %p312 = pneg %p43
      %p313 = pneg %p40
      %s314 = smul.u32 2, %s22
      %p315 = scmp.lt.s32.totalorder %s314, 7
      %s316 = scalar_select %p315, %s314, 7
      %s317 = smul.addr %s316, 8
      %s318 = scalar_lea.vmem %s1, %s317
      %p319 = pneg %p69
      %p320 = pneg %p66
      %p321 = pneg %p90
      %p322 = pneg %p87
      %p323 = pneg %p111
      %p324 = pneg %p108
      %p325 = pneg %p132
      %p326 = pneg %p129
      %p327 = pneg %p153
      %p328 = pneg %p150
      %p329 = pneg %p174
      %p330 = pneg %p171
      %p331 = pneg %p195
      %p332 = pneg %p192
      %p333 = pneg %p216
      %p334 = pneg %p213
      %p335 = pneg %p242
      %p336 = pneg %p239
      %s337 = smul.u32 2, %s22
      %p338 = scmp.lt.s32.totalorder %s337, 7
      %s339 = scalar_select %p338, %s337, 7
      %s340 = smul.addr %s339, 8
      %s341 = scalar_lea.vmem %s9, %s340
      %s342 = smul.u32 2, %s22
      %p343 = scmp.lt.s32.totalorder %s342, 7
      %s344 = scalar_select %p343, %s342, 7
      %s345 = smul.addr %s344, 8
      %s346 = scalar_lea.vmem %s0, %s345
      %s347 = smul.u32 2, %s22
      %s348 = smul.u32 2, %s22
      %p349 = scmp.lt.s32.totalorder %s348, 7
      %s350 = scalar_select %p349, %s348, 7
      %s351 = smul.addr %s350, 8
      %s352 = scalar_lea.vmem %s1, %s351
      %s353 = smul.u32 2, %s22
      %s354 = smul.u32 2, %s22
      %p355 = scmp.lt.s32.totalorder %s354, 7
      %s356 = scalar_select %p355, %s354, 7
      %s357 = smul.addr %s356, 8
      %s358 = scalar_lea.vmem %s9, %s357
      %s359 = smul.u32 2, %s22
      %v361 = vld [vmem:[%s346] sm:$0xff]
      %v362 = vld [vmem:[%s346 + $0x8] sm:$0xff]
      %v363 = vpack.c.bf16 %v362, %v361
      %v364 = vld [vmem:[%s352] sm:$0xff]
      %v365 = vld [vmem:[%s352 + $0x8] sm:$0xff]
      %v366 = vpack.c.bf16 %v365, %v364
      %v367 = vld [vmem:[%s2] sm:$0xf]
      %v368 = vld [vmem:[%s2 + $0x4] sm:$0xf]
      %v369 = vld [vmem:[%s3] sm:$0xf]
      %vm370 = vcmask 64512
      %v372 = vsel %vm370, %v366, 0
      %vm374 = vcmask 1043456
      %v376 = vsel %vm374, %v369, 0
      %378 = vmatprep.subr.bf16.mxu0 0
      %379 = vmatpush1.bf16.msra.mxu0 %v376
      %380 = vmatprep.subr.bf16.mxu0 0
      %381 = vmatpush1.bf16.msra.mxu0 0
      %382 = vmatprep.subr.bf16.mxu0 0
      %383 = vmatpush1.bf16.msra.mxu0 0
      %384 = vmatprep.subr.bf16.mxu0 0
      %385 = vmatpush1.bf16.msra.mxu0 0
      %386 = vmatprep.subr.bf16.mxu0 0
      %387 = vmatpush1.bf16.msra.mxu0 0
      %388 = vmatprep.subr.bf16.mxu0 0
      %389 = vmatpush1.bf16.msra.mxu0 0
      %390 = vmatprep.subr.bf16.mxu0 0
      %391 = vmatpush1.bf16.msra.mxu0 0
      %392 = vmatprep.subr.bf16.mxu0 0
      %393 = vmatpush1.bf16.msra.mxu0 0
      %394 = vmatprep.subr.bf16.mxu0 0
      %395 = vmatpush1.bf16.msra.mxu0 0
      %396 = vmatprep.subr.bf16.mxu0 0
      %397 = vmatpush1.bf16.msra.mxu0 0
      %398 = vmatprep.subr.bf16.mxu0 0
      %399 = vmatpush1.bf16.msra.mxu0 0
      %400 = vmatprep.subr.bf16.mxu0 0
      %401 = vmatpush1.bf16.msra.mxu0 0
      %402 = vmatprep.subr.bf16.mxu0 0
      %403 = vmatpush1.bf16.msra.mxu0 0
      %404 = vmatprep.subr.bf16.mxu0 0
      %405 = vmatpush1.bf16.msra.mxu0 0
      %406 = vmatprep.subr.bf16.mxu0 0
      %407 = vmatpush1.bf16.msra.mxu0 0
      %408 = vmatprep.subr.bf16.mxu0 0
      %409 = vmatpush1.bf16.msra.mxu0 0
      %410 = vmatprep.mubr.bf16.mxu0 0
      %411 = vmatmul.mubr.bf16.gmra.mrb[0].mxu0 %v372
      %v412 = vpop.f32.mrb[0].mxu0
      %v413 = vadd.f32 0.0, %v412
      %v414 = vpop.f32.mrb[0].mxu0
      %v415 = vpop.f32.mrb[0].mxu0
      %v416 = vadd.f32 0.0, %v415
      %v417 = vpop.f32.mrb[0].mxu0
      %418 = vdwg.mxu0
      %v421 = vunpack.c.l.b16 %v367
      %v422 = vunpack.c.l.b16 %v368
      %v423 = vpack.c.b16 %v422, %v421
      %vm425 = vcmask 130048
      %v427 = vsel %vm425, %v363, 0
      %429 = vmatprep.subr.bf16.mxu0 0
      %430 = vmatpush1.bf16.msra.mxu0 %v423
      %431 = vmatprep.subr.bf16.mxu0 0
      %432 = vmatpush1.bf16.msra.mxu0 0
      %433 = vmatprep.subr.bf16.mxu0 0
      %434 = vmatpush1.bf16.msra.mxu0 0
      %435 = vmatprep.subr.bf16.mxu0 0
      %436 = vmatpush1.bf16.msra.mxu0 0
      %437 = vmatprep.subr.bf16.mxu0 0
      %438 = vmatpush1.bf16.msra.mxu0 0
      %439 = vmatprep.subr.bf16.mxu0 0
      %440 = vmatpush1.bf16.msra.mxu0 0
      %441 = vmatprep.subr.bf16.mxu0 0
      %442 = vmatpush1.bf16.msra.mxu0 0
      %443 = vmatprep.subr.bf16.mxu0 0
      %444 = vmatpush1.bf16.msra.mxu0 0
      %445 = vmatprep.subr.bf16.mxu0 0
      %446 = vmatpush1.bf16.msra.mxu0 0
      %447 = vmatprep.subr.bf16.mxu0 0
      %448 = vmatpush1.bf16.msra.mxu0 0
      %449 = vmatprep.subr.bf16.mxu0 0
      %450 = vmatpush1.bf16.msra.mxu0 0
      %451 = vmatprep.subr.bf16.mxu0 0
      %452 = vmatpush1.bf16.msra.mxu0 0
      %453 = vmatprep.subr.bf16.mxu0 0
      %454 = vmatpush1.bf16.msra.mxu0 0
      %455 = vmatprep.subr.bf16.mxu0 0
      %456 = vmatpush1.bf16.msra.mxu0 0
      %457 = vmatprep.subr.bf16.mxu0 0
      %458 = vmatpush1.bf16.msra.mxu0 0
      %459 = vmatprep.subr.bf16.mxu0 0
      %460 = vmatpush1.bf16.msra.mxu0 0
      %461 = vmatprep.mubr.bf16.mxu0 0
      %462 = vmatmul.mubr.bf16.gmra.mrb[0].mxu0 %v427
      %v463 = vpop.f32.mrb[0].mxu0
      %v464 = vadd.f32 %v413, %v463
      %v465 = vpop.f32.mrb[0].mxu0
      %v466 = vpop.f32.mrb[0].mxu0
      %v467 = vadd.f32 %v416, %v466
      %v468 = vpop.f32.mrb[0].mxu0
      %469 = vdwg.mxu0
      %v470 = vld [vmem:[%s4] sm:$0x1]
      %v472 = vlaneseq
      %v473 = vshrl.u32 %v472, 7
      %v474 = vsub.s32 0, %v473
      %v475 = vrot.slane %v470, %v474
      %v477 = vadd.f32 %v464, %v475
      %v478 = vadd.f32 %v467, %v475
      %v479 = vmax.f32 %v477, 0.0
      %v480 = vmax.f32 %v478, 0.0
      %v481 = vpack.c.bf16 %v480, %v479
      %v482 = vld [vmem:[%s5] sm:$0xf]
      %v483 = vld [vmem:[%s5 + $0x4] sm:$0xf]
      %v484 = vld [vmem:[%s5 + $0x8] sm:$0xf]
      %v485 = vld [vmem:[%s5 + $0xc] sm:$0xf]
      %v486 = vld [vmem:[%s6] sm:$0x1]
      %v488 = vlaneseq
      %v489 = vshrl.u32 %v488, 7
      %v490 = vsub.s32 0, %v489
      %v491 = vrot.slane %v486, %v490
      %v497 = vunpack.c.l.b16 %v482
      %v498 = vunpack.c.l.b16 %v483
      %v499 = vunpack.c.l.b16 %v484
      %v500 = vunpack.c.l.b16 %v485
      %v501 = vpack.c.b16 %v498, %v497
      %v502 = vpack.c.b16 %v500, %v499
      %vm505 = vcmask 261120
      %v507 = vsel %vm505, %v481, 0
      %509 = vmatprep.subr.bf16.mxu0 0
      %510 = vmatpush1.bf16.msra.mxu0 %v501
      %511 = vmatprep.subr.bf16.mxu0 0
      %512 = vmatpush1.bf16.msra.mxu0 %v502
      %513 = vmatprep.subr.bf16.mxu0 0
      %514 = vmatpush1.bf16.msra.mxu0 0
      %515 = vmatprep.subr.bf16.mxu0 0
      %516 = vmatpush1.bf16.msra.mxu0 0
      %517 = vmatprep.subr.bf16.mxu0 0
      %518 = vmatpush1.bf16.msra.mxu0 0
      %519 = vmatprep.subr.bf16.mxu0 0
      %520 = vmatpush1.bf16.msra.mxu0 0
      %521 = vmatprep.subr.bf16.mxu0 0
      %522 = vmatpush1.bf16.msra.mxu0 0
      %523 = vmatprep.subr.bf16.mxu0 0
      %524 = vmatpush1.bf16.msra.mxu0 0
      %525 = vmatprep.subr.bf16.mxu0 0
      %526 = vmatpush1.bf16.msra.mxu0 0
      %527 = vmatprep.subr.bf16.mxu0 0
      %528 = vmatpush1.bf16.msra.mxu0 0
      %529 = vmatprep.subr.bf16.mxu0 0
      %530 = vmatpush1.bf16.msra.mxu0 0
      %531 = vmatprep.subr.bf16.mxu0 0
      %532 = vmatpush1.bf16.msra.mxu0 0
      %533 = vmatprep.subr.bf16.mxu0 0
      %534 = vmatpush1.bf16.msra.mxu0 0
      %535 = vmatprep.subr.bf16.mxu0 0
      %536 = vmatpush1.bf16.msra.mxu0 0
      %537 = vmatprep.subr.bf16.mxu0 0
      %538 = vmatpush1.bf16.msra.mxu0 0
      %539 = vmatprep.subr.bf16.mxu0 0
      %540 = vmatpush1.bf16.msra.mxu0 0
      %541 = vmatprep.mubr.bf16.mxu0 0
      %542 = vmatmul.mubr.bf16.gmra.mrb[0].mxu0 %v507
      %v543 = vpop.f32.mrb[0].mxu0
      %v544 = vadd.f32 %v491, %v543
      %v545 = vpop.f32.mrb[0].mxu0
      %v546 = vpop.f32.mrb[0].mxu0
      %v547 = vadd.f32 %v491, %v546
      %v548 = vpop.f32.mrb[0].mxu0
      %549 = vdwg.mxu0
      %v550 = vmax.f32 %v544, 0.0
      %v551 = vmax.f32 %v547, 0.0
      %v552 = vld [vmem:[%s7] sm:$0x1]
      %v554 = vlaneseq
      %v555 = vshrl.u32 %v554, 7
      %v556 = vsub.s32 0, %v555
      %v557 = vrot.slane %v552, %v556
      %v559 = vmul.f32 %v550, %v557
      %v560 = vmul.f32 %v551, %v557
      %v561 = vsel %vm505, %v559, 0.0
      %562 = vadd.xlane.f32.xlu0 %v561
      %v563 = vpop.xlane.xlu0 %562
      %v564 = vsel %vm505, %v560, 0.0
      %565 = vadd.xlane.f32.xlu0 %v564
      %v566 = vpop.xlane.xlu0 %565
      %v567 = vld [vmem:[#allocation2] sm:$0x1]
      %v569 = vlaneseq
      %v570 = vshrl.u32 %v569, 7
      %v571 = vsub.s32 0, %v570
      %v572 = vrot.slane %v567, %v571
      %v574 = vadd.f32 %v563, %v572
      %v575 = vadd.f32 %v566, %v572
      %vm576 = vcmask 7168
      %577 = vst.msk [vmem:[%s358] sm:$0xff] %vm576, %v574
      %578 = vst.msk [vmem:[%s358 + $0x8] sm:$0xff] %vm576, %v575
      %s579 = smul.u32 2, %s22
      %p580 = scmp.lt.s32.totalorder %s579, 7
      %s581 = scalar_select %p580, %s579, 7
      %s582 = smul.addr %s581, 8
      %s583 = scalar_lea.vmem %s9, %s582
      // Predicated region
      $region57: #{soft_q_forward.1} parent=55 // pred_check
        %p584 = pneg %p239
      $region58: #{soft_q_forward.1} parent=55 // pred_check_branch
        %586 = sbr.rel (%p584) target = $region60
      $region59: #{soft_q_forward.1} parent=55 // pred_region
        %s587 = smul.u32 2, %s22
      $region60: #{soft_q_forward.1} parent=55 // pred_fallthru
        _
    $region56: #{soft_q_forward.1} parent=5 // pred_fallthru
      _
    %p588 = scmp.le.s32.totalorder 2, %s17
    // Predicated region
    $region61: #{soft_q_forward.1} parent=5 // pred_check
      %p589 = pneg %p588
    $region62: #{soft_q_forward.1} parent=5 // pred_check_branch
      %591 = sbr.rel (%p589) target = $region64
    $region63: #{soft_q_forward.1} parent=5 // pred_region
      %s592 = ssub.s32 %s17, 2
      // Predicated region
      $region65: #{soft_q_forward.1} parent=63 // pred_check
        %p593 = pneg %p245
      $region66: #{soft_q_forward.1} parent=63 // pred_check_branch
        %595 = sbr.rel (%p593) target = $region68
      $region67: #{soft_q_forward.1} parent=63 // pred_region
        %s596 = smul.u32 2, %s23
        %p597 = scmp.lt.s32.totalorder %s596, 7
        %s598 = scalar_select %p597, %s596, 7
        %s599 = smul.addr %s598, 8
        %s600 = scalar_lea.vmem %s9, %s599
      $region68: #{soft_q_forward.1} parent=63 // pred_fallthru
        _
    $region64: #{soft_q_forward.1} parent=5 // pred_fallthru
      _
  $region6: #{soft_q_forward.1} parent=0 // loop_footer
    %s21 = sadd.s32 1, %s17
  $region7: #{soft_q_forward.1} parent=0 // loop_footer_branch
    %16 = sbr.rel target = $region3
  $region8: #{soft_q_forward.1} parent=0 // loop_exit
    _

</llo_original>
